<compile_context>
chip_gen: v7x
topology: tpu7x:2x2x1
jax: 0.10.0
libtpu: 0.0.40
codegen_flags: <defaults>
</compile_context>

<pallas_src>
import jax
import jax.numpy as jnp
from jax.experimental import pallas as pl
from jax.experimental.pallas import tpu as pltpu

_SUBLANES = 8  # pad the tiny trailing N(=2) axis up to one full sublane group


# --------------------------------------------------------------------------- #
# Kernel
# --------------------------------------------------------------------------- #
def _nlc_fused_kernel(yT_ref, yhatk_ref, yhatm_ref, bias_ref, w_ref, o_ref):
    """Fused  out^T = (exp(y^T * yhat^T) @ W^T) * 1/(1+exp(yhat^T)) + bias^T.

    Grid = (M_pad // tm, K_pad // tk), reduction (k) last.
      yT_ref, yhatk_ref : (8, K_pad) resident slabs (constant block index)
      yhatm_ref, bias_ref: (8, tm)   row-tile blocks (constant in k)
      w_ref             : (tm, tk)   streamed weight tile (natural layout)
      o_ref             : (8, tm)    f32 output block, resident across k
                                     (doubles as the accumulator).
    exp overflow for |values| >~ 88 matches the PyTorch reference semantics.
    """
    k = pl.program_id(1)
    tk = w_ref.shape[1]  # static

    @pl.when(k == 0)
    def _init():
        o_ref[...] = jnp.zeros_like(o_ref)

    # Per-k-tile numerator, computed on the EUP under the weight-tile DMA.
    off = pl.multiple_of(k * tk, tk)
    expo = jnp.exp(yT_ref[:, pl.ds(off, tk)] * yhatk_ref[:, pl.ds(off, tk)])

    w_tile = w_ref[...]
    if w_tile.dtype != jnp.float32:        # optional bf16-streamed weights
        w_tile = w_tile.astype(jnp.float32)

    # A @ B^T on the MXU: LHS (8, tk), RHS (tm, tk), contract last dims -> (8, tm).
    # Weight keeps its natural HBM layout; result is lane-dense over out_features.
    o_ref[...] += jax.lax.dot_general(
        expo,
        w_tile,
        dimension_numbers=(((1,), (1,)), ((), ())),
        preferred_element_type=jnp.float32,
    )

    @pl.when(k == pl.num_programs(1) - 1)
    def _finalize():
        inv = 1.0 / (1.0 + jnp.exp(yhatm_ref[...]))   # denominator, tiny EUP work
        o_ref[...] = o_ref[...] * inv + bias_ref[...]


# --------------------------------------------------------------------------- #
# Tiling helpers
# --------------------------------------------------------------------------- #
def _round_up(x, m):
    return pl.cdiv(x, m) * m


def _choose_tiles(out_features, in_features, tm_pref, tk_pref):
    """Pick (tm, tk).  Big tiles amortize the ~0.35 us per-grid-step overhead;
    tm is capped at ~out_features/2 so gm >= 2 and the parallel row axis can
    shard across v7x's two TensorCores.  Dims are later padded to multiples."""
    # Row tile (second-last dim of the weight block): multiple of 8.
    if out_features <= 256:
        tm = _round_up(out_features, 8)                 # single row tile
    else:
        cap = max(128, (out_features // 2) // 128 * 128)  # keep gm >= 2
        tm = 128
        for t in (2048, 1024, 512, 256, 128):
            if t <= tm_pref and t <= cap:
                tm = t
                break
    # Reduction tile (lane dim of the weight block): multiple of 128.
    if in_features <= 512:
        tk = _round_up(in_features, 128)
    else:
        tk = 128
        for t in (4096, 2048, 1024, 512, 256, 128):
            if t <= tk_pref and t <= in_features:
                tk = t
                break
    return tm, tk


# --------------------------------------------------------------------------- #
# Wrapper
# --------------------------------------------------------------------------- #
def noisy_label_correction(y_i, y_hat_i, weight, bias, *,
                           tm=512, tk=2048, stream_dtype=None):
    in_features, n = y_i.shape
    out_features = weight.shape[0]

    # Clear shape errors instead of confusing lowering failures.
    if weight.shape != (out_features, in_features):
        raise ValueError(f"weight must be (out, in), got {weight.shape}")
    if y_hat_i.shape != (in_features, n):
        raise ValueError(f"y_hat_i must match y_i shape {(in_features, n)}")
    if bias.shape != (out_features, n):
        raise ValueError(f"bias must be (out_features, {n}), got {bias.shape}")
    if in_features != out_features:
        raise ValueError(
            "denominator (in_features, n) must broadcast against W@exponent "
            f"(out_features, n): in={in_features} out={out_features}")
    if n > _SUBLANES:
        raise ValueError(f"trailing dim n={n} > {_SUBLANES} not supported")

    f32 = jnp.float32
    pad_n = (-n) % _SUBLANES

    tm, tk = _choose_tiles(out_features, in_features, tm, tk)
    m_pad = _round_up(out_features, tm)
    k_pad = _round_up(in_features, tk)
    gm = m_pad // tm
    gk = k_pad // tk

    # ---- layout plumbing only: transpose so `features` is the 128-lane axis,
    #      pad the 2-wide axis to 8 sublanes and the feature axes to tile
    #      multiples.  Zero K-padding is exact: exp(0)=1 but the padded weight
    #      columns are zero, so they contribute nothing.  Padded M rows and
    #      padded sublanes are discarded by the final slice.
    def _t(x, feat_pad):
        return jnp.pad(x.T.astype(f32), ((0, pad_n), (0, feat_pad)))

    yT = _t(y_i, k_pad - in_features)          # (8, K_pad)  resident slab
    yhatT_k = _t(y_hat_i, k_pad - in_features)  # (8, K_pad)  resident slab
    yhatT_m = _t(y_hat_i, m_pad - out_features)  # (8, M_pad) denominator rows
    biasT = _t(bias, m_pad - out_features)       # (8, M_pad)

    w_dtype = f32 if stream_dtype is None else jnp.dtype(stream_dtype)
    w = jnp.pad(weight.astype(w_dtype),
                ((0, m_pad - out_features), (0, k_pad - in_features)))
    itemsize = jnp.dtype(w_dtype).itemsize

    # Advisory cost estimate so XLA can schedule around the custom call.
    cost = pl.CostEstimate(
        flops=2 * _SUBLANES * m_pad * k_pad,
        transcendentals=_SUBLANES * (k_pad * gm + m_pad),
        bytes_accessed=(m_pad * k_pad * itemsize
                        + 4 * _SUBLANES * (2 * k_pad + 3 * m_pad)),
    )

    # VMEM budget: ~2 weight buffers + resident slabs + small row tiles.
    # Default tiles (512, 2048) f32 -> ~4 MiB/buffer, well inside the 32 MiB
    # scoped default on v6e and v7x's 64 MiB physical VMEM.
    weight_tile_bytes = tm * tk * itemsize
    small_bytes = 4 * _SUBLANES * (2 * k_pad + 3 * m_pad)
    vmem_limit = int(min(
        max(32 * 1024 * 1024,
            3 * weight_tile_bytes + 2 * small_bytes + (4 << 20)),
        48 * 1024 * 1024))

    outT = pl.pallas_call(
        _nlc_fused_kernel,
        out_shape=jax.ShapeDtypeStruct((_SUBLANES, m_pad), f32),
        grid_spec=pltpu.PrefetchScalarGridSpec(
            num_scalar_prefetch=0,
            grid=(gm, gk),                                    # reduction last
            in_specs=[
                # y^T / y_hat^T: fully resident (constant block index, fetched once)
                pl.BlockSpec((_SUBLANES, k_pad), lambda i, k: (0, 0)),
                pl.BlockSpec((_SUBLANES, k_pad), lambda i, k: (0, 0)),
                # denominator rows + bias: constant in k, re-fetched only per i
                pl.BlockSpec((_SUBLANES, tm), lambda i, k: (0, i)),
                pl.BlockSpec((_SUBLANES, tm), lambda i, k: (0, i)),
                # the streamed weight tile -- the only HBM-bound operand
                # (for v7x, pipeline_mode=pl.Buffered(3) here if DMA gaps show up)
                pl.BlockSpec((tm, tk), lambda i, k: (i, k)),
            ],
            out_specs=pl.BlockSpec((_SUBLANES, tm), lambda i, k: (0, i)),
        ),
        compiler_params=pltpu.CompilerParams(
            # row tiles shard across v7x's 2 TensorCores; K is the reduction.
            dimension_semantics=("parallel", "arbitrary"),
            vmem_limit_bytes=vmem_limit,
        ),
        cost_estimate=cost,
    )(yT, yhatT_k, yhatT_m, biasT, w)

    # Strip sublane + row padding; return in PyTorch layout (out_features, n).
    return outT[:n, :out_features].T


# --------------------------------------------------------------------------- #
# Reference + test
# --------------------------------------------------------------------------- #
def reference(y_i, y_hat_i, weight, bias):
    exponent = jnp.exp(y_i * y_hat_i)
    denominator = 1.0 + jnp.exp(y_hat_i)
    return jnp.dot(weight, exponent) / denominator + bias


def _run_case(key, in_features, n=2, **kw):
    out_features = in_features
    k1, k2, k3, k4 = jax.random.split(key, 4)
    # Moderate scales keep exp() well-conditioned so the tolerance check is tight.
    y_i = 0.5 * jax.random.normal(k1, (in_features, n), dtype=jnp.float32)
    y_hat_i = 0.5 * jax.random.normal(k2, (in_features, n), dtype=jnp.float32)
    weight = 0.1 * jax.random.normal(k3, (out_features, in_features), dtype=jnp.float32)
    bias = (0.1 * jax.random.normal(k4, (out_features * n,), dtype=jnp.float32)
            ).reshape(out_features, -1)

    out = noisy_label_correction(y_i, y_hat_i, weight, bias, **kw)
    out = jax.block_until_ready(out)

    ref = reference(y_i, y_hat_i, weight, bias)
    assert out.shape == (out_features, n)
    # Tolerance covers f32 accumulation-order differences of the tiled reduction.
    assert jnp.allclose(out, ref, atol=5e-4, rtol=5e-4), (
        f"mismatch vs reference at in_features={in_features}")


if __name__ == "__main__":
    key = jax.random.PRNGKey(0)
    k_small, k_pad, k_big = jax.random.split(key, 3)

    # Tiny case (matches the toy PyTorch usage): single-block grid (1, 1).
    _run_case(k_small, 32)
    # Non-divisible case: exercises host-side zero padding of M/K (1000 -> 1024),
    # grid (4, 2) with the K-reduction accumulating directly into the output block.
    _run_case(k_pad, 1000)
    # Tiled case with an explicit tk so the grid is (2, 2): exercises the parallel
    # row axis (v7x megacore), the resident y/y_hat slabs and lane-dense stores.
    _run_case(k_big, 1024, tk=512)

    print("KERNEL_OK")
</pallas_src>

<mosaic_0001>
module attributes {stable_mosaic.version = 11 : i64} {
  func.func @_nlc_fused_kernel(%arg0: i32, %arg1: i32, %arg2: memref<8x128xf32, #tpu.memory_space<vmem>>, %arg3: memref<8x128xf32, #tpu.memory_space<vmem>>, %arg4: memref<8x32xf32, #tpu.memory_space<vmem>>, %arg5: memref<8x32xf32, #tpu.memory_space<vmem>>, %arg6: memref<32x128xf32, #tpu.memory_space<vmem>>, %arg7: memref<8x32xf32, #tpu.memory_space<vmem>>) attributes {dimension_semantics = [#tpu.dimension_semantics<parallel>, #tpu.dimension_semantics<arbitrary>], iteration_bounds = array<i64: 1, 1>, scalar_prefetch = 0 : i64, scratch_operands = 0 : i64, tpu.core_type = #tpu.core_type<tc>, window_params = [{pipeline_mode = #tpu.pipeline_mode<synchronous>, transform_indices = @transform_0, window_bounds = array<i64: 8, 128>}, {pipeline_mode = #tpu.pipeline_mode<synchronous>, transform_indices = @transform_1, window_bounds = array<i64: 8, 128>}, {transform_indices = @transform_2, window_bounds = array<i64: 8, 32>}, {transform_indices = @transform_3, window_bounds = array<i64: 8, 32>}, {transform_indices = @transform_4, window_bounds = array<i64: 32, 128>}, {transform_indices = @transform_5, window_bounds = array<i64: 8, 32>}]} {
    %c0_i32 = arith.constant 0 : i32
    %0 = arith.cmpi eq, %arg1, %c0_i32 : i32
    %1 = arith.extui %0 : i1 to i32
    %c0_i32_0 = arith.constant 0 : i32
    %2 = arith.cmpi ne, %1, %c0_i32_0 : i32
    scf.if %2 {
      %cst_10 = arith.constant 0.000000e+00 : f32
      %19 = vector.broadcast %cst_10 : f32 to vector<8x32xf32>
      %c0_11 = arith.constant 0 : index
      %c0_12 = arith.constant 0 : index
      %20 = vector.load %arg7[%c0_11, %c0_12] : memref<8x32xf32, #tpu.memory_space<vmem>>, vector<8x32xf32>
      tpu.vector_store %arg7[%c0_11, %c0_12], %19 {strides = array<i32>} : memref<8x32xf32, #tpu.memory_space<vmem>>, vector<8x32xf32>,
    } else {
    }
    %c128_i32 = arith.constant 128 : i32
    %3 = arith.muli %arg1, %c128_i32 : i32
    %4 = tpu.assume_multiple %3, 128 : i32
    %c0 = arith.constant 0 : index
    %5 = arith.index_cast %4 : i32 to index
    %6 = vector.load %arg2[%c0, %5] : memref<8x128xf32, #tpu.memory_space<vmem>>, vector<8x128xf32>
    %c0_1 = arith.constant 0 : index
    %7 = arith.index_cast %4 : i32 to index
    %8 = vector.load %arg3[%c0_1, %7] : memref<8x128xf32, #tpu.memory_space<vmem>>, vector<8x128xf32>
    %9 = arith.mulf %6, %8 : vector<8x128xf32>
    %10 = math.exp %9 : vector<8x128xf32>
    %c0_2 = arith.constant 0 : index
    %c0_3 = arith.constant 0 : index
    %11 = vector.load %arg6[%c0_2, %c0_3] : memref<32x128xf32, #tpu.memory_space<vmem>>, vector<32x128xf32>
    %c0_4 = arith.constant 0 : index
    %c0_5 = arith.constant 0 : index
    %12 = vector.load %arg7[%c0_4, %c0_5] : memref<8x32xf32, #tpu.memory_space<vmem>>, vector<8x32xf32>
    %cst = arith.constant dense<0.000000e+00> : vector<8x32xf32>
    %13 = tpu.matmul %10, %11, %cst {dimension_numbers = #tpu.dot_dimension_numbers<[1], [1], [0], [0], [0, 0, 1, 0], [], []>} : vector<8x128xf32>, vector<32x128xf32>, vector<8x32xf32> -> vector<8x32xf32>
    %14 = arith.addf %12, %13 : vector<8x32xf32>
    %c0_6 = arith.constant 0 : index
    %c0_7 = arith.constant 0 : index
    %15 = vector.load %arg7[%c0_6, %c0_7] : memref<8x32xf32, #tpu.memory_space<vmem>>, vector<8x32xf32>
    tpu.vector_store %arg7[%c0_6, %c0_7], %14 {strides = array<i32>} : memref<8x32xf32, #tpu.memory_space<vmem>>, vector<8x32xf32>,
    %c0_i32_8 = arith.constant 0 : i32
    %16 = arith.cmpi eq, %arg1, %c0_i32_8 : i32
    %17 = arith.extui %16 : i1 to i32
    %c0_i32_9 = arith.constant 0 : i32
    %18 = arith.cmpi ne, %17, %c0_i32_9 : i32
    scf.if %18 {
      %c0_10 = arith.constant 0 : index
      %c0_11 = arith.constant 0 : index
      %19 = vector.load %arg4[%c0_10, %c0_11] : memref<8x32xf32, #tpu.memory_space<vmem>>, vector<8x32xf32>
      %20 = math.exp %19 : vector<8x32xf32>
      %cst_12 = arith.constant 1.000000e+00 : f32
      %21 = vector.broadcast %cst_12 : f32 to vector<8x32xf32>
      %22 = arith.addf %21, %20 : vector<8x32xf32>
      %cst_13 = arith.constant 1.000000e+00 : f32
      %23 = vector.broadcast %cst_13 : f32 to vector<8x32xf32>
      %24 = arith.divf %23, %22 : vector<8x32xf32>
      %c0_14 = arith.constant 0 : index
      %c0_15 = arith.constant 0 : index
      %25 = vector.load %arg7[%c0_14, %c0_15] : memref<8x32xf32, #tpu.memory_space<vmem>>, vector<8x32xf32>
      %26 = arith.mulf %25, %24 : vector<8x32xf32>
      %c0_16 = arith.constant 0 : index
      %c0_17 = arith.constant 0 : index
      %27 = vector.load %arg5[%c0_16, %c0_17] : memref<8x32xf32, #tpu.memory_space<vmem>>, vector<8x32xf32>
      %28 = arith.addf %26, %27 : vector<8x32xf32>
      %c0_18 = arith.constant 0 : index
      %c0_19 = arith.constant 0 : index
      %29 = vector.load %arg7[%c0_18, %c0_19] : memref<8x32xf32, #tpu.memory_space<vmem>>, vector<8x32xf32>
      tpu.vector_store %arg7[%c0_18, %c0_19], %28 {strides = array<i32>} : memref<8x32xf32, #tpu.memory_space<vmem>>, vector<8x32xf32>,
    } else {
    }
    return
  }
  func.func @transform_0(%arg0: i32, %arg1: i32) -> (i32, i32) {
    %c0_i32 = arith.constant 0 : i32
    %c0_i32_0 = arith.constant 0 : i32
    %c0_i32_1 = arith.constant 0 : i32
    return %c0_i32, %c0_i32_0 : i32, i32
  }
  func.func @transform_1(%arg0: i32, %arg1: i32) -> (i32, i32) {
    %c0_i32 = arith.constant 0 : i32
    %c0_i32_0 = arith.constant 0 : i32
    %c0_i32_1 = arith.constant 0 : i32
    return %c0_i32, %c0_i32_0 : i32, i32
  }
  func.func @transform_2(%arg0: i32, %arg1: i32) -> (i32, i32) {
    %c0_i32 = arith.constant 0 : i32
    %c0_i32_0 = arith.constant 0 : i32
    return %c0_i32, %arg0 : i32, i32
  }
  func.func @transform_3(%arg0: i32, %arg1: i32) -> (i32, i32) {
    %c0_i32 = arith.constant 0 : i32
    %c0_i32_0 = arith.constant 0 : i32
    return %c0_i32, %arg0 : i32, i32
  }
  func.func @transform_4(%arg0: i32, %arg1: i32) -> (i32, i32) {
    %c0_i32 = arith.constant 0 : i32
    return %arg0, %arg1 : i32, i32
  }
  func.func @transform_5(%arg0: i32, %arg1: i32) -> (i32, i32) {
    %c0_i32 = arith.constant 0 : i32
    %c0_i32_0 = arith.constant 0 : i32
    return %c0_i32, %arg0 : i32, i32
  }
}

</mosaic_0001>

<llo_original>
// kernel: tpu_custom_call.1
$region0: #{tpu_custom_call.1}
  #allocation0 [shape = 'u32[]', space=smem, size = 0x4, offset = 0x4, fixed_abs, tag = 'smem constant byte address 0x4 - core index']
  #allocation1 [shape = 'u32[144,128]{1,0:T(1,128)}', space=vmem, size = 0x12000, scoped, tag = 'internal scratch']
  %s0 = inlined_call_operand.hbm [shape: f32[8,128], index: 0, kind: input, shape index: {}]
  %s1 = inlined_call_operand.hbm [shape: f32[8,128], index: 1, kind: input, shape index: {}]
  %s2 = inlined_call_operand.hbm [shape: f32[8,32], index: 2, kind: input, shape index: {}]
  %s3 = inlined_call_operand.vmem [shape: f32[8,32], index: 3, kind: input, shape index: {}]
  %s4 = inlined_call_operand.hbm [shape: f32[32,128], index: 4, kind: input, shape index: {}]
  %s5 = inlined_call_operand.hbm [shape: f32[8,32], index: 5, kind: output, shape index: {}]
  %s6 = sld [smem:[#allocation0]]
  $region54: #{tpu_custom_call.1} parent=0
    _
  %s8 = ssub.s32 1, %s6
  %s9 = scalar_select 0, %s8, %s6
  $region1: #{tpu_custom_call.1} parent=0
    #allocation2 [shape = 'u8[4096]{0}', space=vmem, size = 0x1000, scoped, tag = 'input window, operand 0, single buffered']
    #allocation3 [shape = 's32[1]{0}', space=sflag, size = 0x4, scoped, tag = 'scoped memory for tpu_custom_call.1']
    #allocation4 [shape = 's32[1]{0}', space=sflag, size = 0x4, scoped, tag = 'scoped memory for tpu_custom_call.1']
    #allocation5 [shape = 'u8[4096]{0}', space=vmem, size = 0x1000, scoped, tag = 'input window, operand 1, single buffered']
    #allocation6 [shape = 's32[1]{0}', space=sflag, size = 0x4, scoped, tag = 'scoped memory for tpu_custom_call.1']
    #allocation7 [shape = 'u8[4096]{0}', space=vmem, size = 0x1000, scoped, tag = 'input window, operand 2, single buffered']
    #allocation8 [shape = 'u8[16384]{0}', space=vmem, size = 0x4000, scoped, tag = 'input window, operand 4, single buffered']
    #allocation9 [shape = 's32[1]{0}', space=sflag, size = 0x4, scoped, tag = 'scoped memory for tpu_custom_call.1']
    #allocation10 [shape = 'u8[4096]{0}', space=vmem, size = 0x1000, scoped, tag = 'output window, operand 0, single buffered']
    %10 = vsyncpa [#allocation3], 0
    %11 = vsyncpa [#allocation6], 0
    %12 = vsyncpa [#allocation9], 0
    %13 = vsyncpa [#allocation4], 0
    // Predicated region
    $region2: #{tpu_custom_call.1} parent=1 // pred_check
      _
    $region3: #{tpu_custom_call.1} parent=1 // pred_check_branch
      %15 = sbr.rel (0) target = $region5
    $region4: #{tpu_custom_call.1} parent=1 // pred_region
      %s17 = ssub.s32 128, 128
      %18 = vsyncadd [#allocation3], %s17
      %s20 = sshll.u32 [#allocation2], 4
      %s21 = int_to_ptr.vmem [resolvable:$true] %s20
      %23 = dma.hbm_to_vmem [thread:$0]  %s0, 128, %s21, [#allocation3]
    $region5: #{tpu_custom_call.1} parent=1 // pred_fallthru
      _
    // Predicated region
    $region6: #{tpu_custom_call.1} parent=1 // pred_check
      _
    $region7: #{tpu_custom_call.1} parent=1 // pred_check_branch
      %25 = sbr.rel (0) target = $region9
    $region8: #{tpu_custom_call.1} parent=1 // pred_region
      %s27 = ssub.s32 128, 128
      %28 = vsyncadd [#allocation6], %s27
      %s30 = sshll.u32 [#allocation5], 4
      %s31 = int_to_ptr.vmem [resolvable:$true] %s30
      %33 = dma.hbm_to_vmem [thread:$0]  %s1, 128, %s31, [#allocation6]
    $region9: #{tpu_custom_call.1} parent=1 // pred_fallthru
      _
    // Predicated region
    $region10: #{tpu_custom_call.1} parent=1 // pred_check
      _
    $region11: #{tpu_custom_call.1} parent=1 // pred_check_branch
      %35 = sbr.rel (0) target = $region13
    $region12: #{tpu_custom_call.1} parent=1 // pred_region
      %s37 = ssub.s32 128, 128
      %38 = vsyncadd [#allocation6], %s37
      %s40 = sshll.u32 [#allocation7], 4
      %s41 = int_to_ptr.vmem [resolvable:$true] %s40
      %43 = dma.hbm_to_vmem [thread:$0]  %s2, 128, %s41, [#allocation6]
    $region13: #{tpu_custom_call.1} parent=1 // pred_fallthru
      _
    // Predicated region
    $region14: #{tpu_custom_call.1} parent=1 // pred_check
      _
    $region15: #{tpu_custom_call.1} parent=1 // pred_check_branch
      %45 = sbr.rel (0) target = $region17
    $region16: #{tpu_custom_call.1} parent=1 // pred_region
      _
    $region17: #{tpu_custom_call.1} parent=1 // pred_fallthru
      _
    // Predicated region
    $region18: #{tpu_custom_call.1} parent=1 // pred_check
      _
    $region19: #{tpu_custom_call.1} parent=1 // pred_check_branch
      %47 = sbr.rel (0) target = $region21
    $region20: #{tpu_custom_call.1} parent=1 // pred_region
      %s49 = ssub.s32 512, 512
      %50 = vsyncadd [#allocation9], %s49
      %s51 = sshll.u32 [#allocation8], 4
      %s52 = int_to_ptr.vmem [resolvable:$true] %s51
      %57 = dma.hbm_to_vmem [thread:$0]  %s4, 512, %s52, [#allocation9], 128, 128, 8
    $region21: #{tpu_custom_call.1} parent=1 // pred_fallthru
      _
    // Predicated region
    $region22: #{tpu_custom_call.1} parent=1 // pred_check
      _
    $region23: #{tpu_custom_call.1} parent=1 // pred_check_branch
      %59 = sbr.rel (0) target = $region25
    $region24: #{tpu_custom_call.1} parent=1 // pred_region
      %60 = dma.done [#allocation3], 128
    $region25: #{tpu_custom_call.1} parent=1 // pred_fallthru
      _
    // Predicated region
    $region26: #{tpu_custom_call.1} parent=1 // pred_check
      _
    $region27: #{tpu_custom_call.1} parent=1 // pred_check_branch
      %62 = sbr.rel (0) target = $region29
    $region28: #{tpu_custom_call.1} parent=1 // pred_region
      %63 = dma.done [#allocation6], 128
    $region29: #{tpu_custom_call.1} parent=1 // pred_fallthru
      _
    // Predicated region
    $region30: #{tpu_custom_call.1} parent=1 // pred_check
      _
    $region31: #{tpu_custom_call.1} parent=1 // pred_check_branch
      %65 = sbr.rel (0) target = $region33
    $region32: #{tpu_custom_call.1} parent=1 // pred_region
      %66 = dma.done [#allocation6], 128
    $region33: #{tpu_custom_call.1} parent=1 // pred_fallthru
      _
    // Predicated region
    $region34: #{tpu_custom_call.1} parent=1 // pred_check
      _
    $region35: #{tpu_custom_call.1} parent=1 // pred_check_branch
      %68 = sbr.rel (0) target = $region37
    $region36: #{tpu_custom_call.1} parent=1 // pred_region
      %69 = dma.done [#allocation9], 512
    $region37: #{tpu_custom_call.1} parent=1 // pred_fallthru
      _
    %p70 = scmp.eq.s32.totalorder 0, 0
    // Predicated region
    $region38: #{tpu_custom_call.1} parent=1 // pred_check
      %p71 = pneg %p70
    $region39: #{tpu_custom_call.1} parent=1 // pred_check_branch
      %73 = sbr.rel (%p71) target = $region41
    $region40: #{tpu_custom_call.1} parent=1 // pred_region
      %vm74 = vcmask 261120
      %75 = vst.msk [vmem:[#allocation10] sm:$0xff] %vm74, 0.0
    $region41: #{tpu_custom_call.1} parent=1 // pred_fallthru
      _
    %s76 = smul.u32 0, 128
    %s77 = sshra.s32 %s76, 7
    %s78 = sand.u32 %s76, 127
    %s79 = scalar_lea.vmem [#allocation2], %s77
    %v80 = vld [vmem:[%s79] sm:$0xff]
    %s81 = scalar_lea.vmem [#allocation5], %s77
    %v82 = vld [vmem:[%s81] sm:$0xff]
    %v83 = vmul.f32 %v80, %v82
    %v84 = vmul.f32 %v83, 1.442695
    %v85 = vpow.pop %v84
    %v86 = vld [vmem:[#allocation8] sm:$0xff]
    %v87 = vld [vmem:[#allocation8 + $0x8] sm:$0xff]
    %v88 = vld [vmem:[#allocation8 + $0x10] sm:$0xff]
    %v89 = vld [vmem:[#allocation8 + $0x18] sm:$0xff]
    %v90 = vld [vmem:[#allocation10] sm:$0xff]
    %91 = vmatprep.subr.mxu0 0.0
    %92 = vmatpush1.xpose.msra.mxu0 %v86
    %93 = vmatprep.subr.mxu0 0.0
    %94 = vmatpush1.xpose.msra.mxu0 %v87
    %95 = vmatprep.subr.mxu0 0.0
    %96 = vmatpush1.xpose.msra.mxu0 %v88
    %97 = vmatprep.subr.mxu0 0.0
    %98 = vmatpush1.xpose.msra.mxu0 %v89
    %99 = vmatprep.subr.mxu0 0.0
    %100 = vmatpush1.xpose.msra.mxu0 0.0
    %101 = vmatprep.subr.mxu0 0.0
    %102 = vmatpush1.xpose.msra.mxu0 0.0
    %103 = vmatprep.subr.mxu0 0.0
    %104 = vmatpush1.xpose.msra.mxu0 0.0
    %105 = vmatprep.subr.mxu0 0.0
    %106 = vmatpush1.xpose.msra.mxu0 0.0
    %107 = vmatprep.subr.mxu0 0.0
    %108 = vmatpush1.xpose.msra.mxu0 0.0
    %109 = vmatprep.subr.mxu0 0.0
    %110 = vmatpush1.xpose.msra.mxu0 0.0
    %111 = vmatprep.subr.mxu0 0.0
    %112 = vmatpush1.xpose.msra.mxu0 0.0
    %113 = vmatprep.subr.mxu0 0.0
    %114 = vmatpush1.xpose.msra.mxu0 0.0
    %115 = vmatprep.subr.mxu0 0.0
    %116 = vmatpush1.xpose.msra.mxu0 0.0
    %117 = vmatprep.subr.mxu0 0.0
    %118 = vmatpush1.xpose.msra.mxu0 0.0
    %119 = vmatprep.subr.mxu0 0.0
    %120 = vmatpush1.xpose.msra.mxu0 0.0
    %121 = vmatprep.subr.mxu0 0.0
    %122 = vmatpush1.xpose.msra.mxu0 0.0
    %123 = vmatprep.subr.mxu0 0.0
    %124 = vmatpush1.xpose.msra.mxu0 0.0
    %125 = vmatprep.subr.mxu0 0.0
    %126 = vmatpush1.xpose.msra.mxu0 0.0
    %127 = vmatprep.subr.mxu0 0.0
    %128 = vmatpush1.xpose.msra.mxu0 0.0
    %129 = vmatprep.subr.mxu0 0.0
    %130 = vmatpush1.xpose.msra.mxu0 0.0
    %131 = vmatprep.subr.mxu0 0.0
    %132 = vmatpush1.xpose.msra.mxu0 0.0
    %133 = vmatprep.subr.mxu0 0.0
    %134 = vmatpush1.xpose.msra.mxu0 0.0
    %135 = vmatprep.subr.mxu0 0.0
    %136 = vmatpush1.xpose.msra.mxu0 0.0
    %137 = vmatprep.subr.mxu0 0.0
    %138 = vmatpush1.xpose.msra.mxu0 0.0
    %139 = vmatprep.subr.mxu0 0.0
    %140 = vmatpush1.xpose.msra.mxu0 0.0
    %141 = vmatprep.subr.mxu0 0.0
    %142 = vmatpush1.xpose.msra.mxu0 0.0
    %143 = vmatprep.subr.mxu0 0.0
    %144 = vmatpush1.xpose.msra.mxu0 0.0
    %145 = vmatprep.subr.mxu0 0.0
    %146 = vmatpush1.xpose.msra.mxu0 0.0
    %147 = vmatprep.subr.mxu0 0.0
    %148 = vmatpush1.xpose.msra.mxu0 0.0
    %149 = vmatprep.subr.mxu0 0.0
    %150 = vmatpush1.xpose.msra.mxu0 0.0
    %151 = vmatprep.subr.mxu0 0.0
    %152 = vmatpush1.xpose.msra.mxu0 0.0
    %153 = vmatprep.subr.mxu0 0.0
    %154 = vmatpush1.xpose.msra.mxu0 0.0
    %155 = vmatprep.mubr.f32.mxu0 0.0
    %156 = vmatmul.mubr.f32.gmra.mrb[0].mxu0 %v85
    %v157 = vpop.f32.mrb[0].mxu0
    %v158 = vadd.f32 0.0, %v157
    %v159 = vpop.f32.mrb[0].mxu0
    %160 = vdwg.mxu0
    %v161 = vadd.f32 %v90, %v158
    %vm162 = vcmask 261120
    %163 = vst.msk [vmem:[#allocation10] sm:$0xff] %vm162, %v161
    // Predicated region
    $region42: #{tpu_custom_call.1} parent=1 // pred_check
      %p164 = pneg %p70
    $region43: #{tpu_custom_call.1} parent=1 // pred_check_branch
      %166 = sbr.rel (%p164) target = $region45
    $region44: #{tpu_custom_call.1} parent=1 // pred_region
      %v167 = vld [vmem:[#allocation7] sm:$0xff]
      %v168 = vmul.f32 %v167, 1.442695
      %v169 = vpow.pop %v168
      %v170 = vadd.f32 %v169, 1.0
      %v171 = vrcp.pop %v170
      %v172 = vmul.f32 1.0, %v171
      %v173 = vld [vmem:[#allocation10] sm:$0xff]
      %v174 = vmul.f32 %v173, %v172
      %v175 = vld [vmem:[%s3] sm:$0xff]
      %v176 = vadd.f32 %v174, %v175
      %177 = vst.msk [vmem:[#allocation10] sm:$0xff] %vm162, %v176
    $region45: #{tpu_custom_call.1} parent=1 // pred_fallthru
      _
    // Predicated region
    $region46: #{tpu_custom_call.1} parent=1 // pred_check
      _
    $region47: #{tpu_custom_call.1} parent=1 // pred_check_branch
      %179 = sbr.rel (0) target = $region49
    $region48: #{tpu_custom_call.1} parent=1 // pred_region
      %s181 = ssub.s32 128, 128
      %182 = vsyncadd [#allocation4], %s181
      %s184 = sshll.u32 [#allocation10], 4
      %s185 = int_to_ptr.vmem [resolvable:$true] %s184
      %187 = dma.vmem_to_hbm [thread:$0]  %s185, 128, %s5, [#allocation4]
    $region49: #{tpu_custom_call.1} parent=1 // pred_fallthru
      _
    // Predicated region
    $region50: #{tpu_custom_call.1} parent=1 // pred_check
      _
    $region51: #{tpu_custom_call.1} parent=1 // pred_check_branch
      %189 = sbr.rel (0) target = $region53
    $region52: #{tpu_custom_call.1} parent=1 // pred_region
      %190 = dma.done [#allocation4], 128
    $region53: #{tpu_custom_call.1} parent=1 // pred_fallthru
      _
    %191 = vsyncpa [#allocation3], 1
    %192 = vsyncpa [#allocation6], 1
    %193 = vsyncpa [#allocation9], 1
    %194 = vsyncpa [#allocation4], 1

</llo_original>
